<compile_context>
chip_gen: v7x
topology: tpu7x:2x2x1
jax: 0.10.0
libtpu: 0.0.40
codegen_flags: <defaults>
</compile_context>

<pallas_src>
import jax
import jax.numpy as jnp
from jax.experimental import pallas as pl
from jax.experimental.pallas import tpu as pltpu


OUT_CH = 2
KSIZE = 3
PAD = 1


def _round_up(x, m):
    return ((x + m - 1) // m) * m


def _vmem_capacity_bytes():
    """Physical VMEM per TensorCore (v5e/v6e: 128 MiB, v7x: 64 MiB)."""
    try:
        cap = int(getattr(pltpu.get_tpu_info(), "vmem_capacity_bytes"))
        if cap > 0:
            return cap
    except Exception:
        pass
    return 64 * 1024 * 1024  # conservative default = v7x per-TC VMEM


def _conv1d_kernel(x_ref, w_ref, b_ref, o_ref):
    # x_ref: (Bt, C_in, L)            unpadded input block
    # w_ref: (KSIZE*OUT_CH, C_in)     tap-major flat weight: w[k*2 + o, c] = W[o, c, k]
    # b_ref: (OUT_CH, 1)              bias
    # o_ref: (Bt, OUT_CH, L)          output block
    x = x_ref[...]
    bt, c_in, seq_len = x.shape

    # One fused MXU contraction over C_in for all 3 taps and both out channels:
    #   p[b, k*2+o, l] = sum_c W[o, c, k] * x[b, c, l]
    w6 = jnp.broadcast_to(w_ref[...][None, :, :], (bt, KSIZE * OUT_CH, c_in))
    p = jnp.einsum("bpc,bcl->bpl", w6, x,
                   preferred_element_type=jnp.float32)       # (Bt, 6, L) f32

    p_left = p[:, 0 * OUT_CH:1 * OUT_CH, :]    # tap k=0: contributes at l from x[l-1]
    p_mid = p[:, 1 * OUT_CH:2 * OUT_CH, :]     # tap k=1: aligned
    p_right = p[:, 2 * OUT_CH:3 * OUT_CH, :]   # tap k=2: contributes at l from x[l+1]

    # padding=1 boundary handled with zero columns on the tiny (Bt, 2, L) partials.
    zcol = jnp.zeros((bt, OUT_CH, 1), jnp.float32)
    y = p_mid
    y = y + jnp.concatenate([zcol, p_left[:, :, : seq_len - 1]], axis=2)
    y = y + jnp.concatenate([p_right[:, :, 1:], zcol], axis=2)
    y = y + b_ref[...][None, :, :].astype(jnp.float32)

    o_ref[...] = y.astype(o_ref.dtype)


def fine_tuning_classifier_forward(z_n, weight, bias):
    """z_n: (B, zn_size, L) -> (B, 2, L); equivalent to nn.Conv1d(zn, 2, 3, padding=1)."""
    B, c_in, L = z_n.shape
    assert weight.shape == (OUT_CH, c_in, KSIZE)
    assert bias.shape == (OUT_CH,)

    # Wrapper-side (free) re-layouts: tap-major flat weight and 2-D bias.
    #   w6[k*OUT_CH + o, c] = W[o, c, k]
    w6 = jnp.transpose(weight, (2, 0, 1)).reshape(KSIZE * OUT_CH, c_in)
    bias2d = bias.reshape(OUT_CH, 1)

    # ---- VMEM-aware batch chunking -----------------------------------------
    vmem_cap = _vmem_capacity_bytes()
    # Scoped VMEM limit: ~75% of physical, capped near 100 MiB (v5e/v6e);
    # on v7x (64 MiB/TC) this yields 48 MiB.
    vmem_limit = int(min(int(vmem_cap * 0.75), 100 * 1024 * 1024))

    itemsize = jnp.dtype(z_n.dtype).itemsize
    # Per-batch-row VMEM footprint, (8,128)-tiled:
    in_row = _round_up(c_in, 8) * _round_up(L, 128) * itemsize
    out_row = _round_up(OUT_CH, 8) * _round_up(L, 128) * itemsize
    p_row = _round_up(KSIZE * OUT_CH, 8) * _round_up(L, 128) * 4
    # 2x double-buffered input + 1x in-kernel input copy + 2x output buffers
    # + ~3x small f32 temporaries (partials p, shifted copies, accumulator y).
    per_row = 3 * in_row + 2 * out_row + 3 * p_row
    block_budget = int(vmem_limit * 0.8)
    block_b = int(min(B, max(1, block_budget // per_row)))
    grid_b = pl.cdiv(B, block_b)
    # TODO(synk): for very large L, also tile L with a 1-column halo instead of
    # relying on batch chunking alone.

    return pl.pallas_call(
        _conv1d_kernel,
        out_shape=jax.ShapeDtypeStruct((B, OUT_CH, L), z_n.dtype),
        grid_spec=pltpu.PrefetchScalarGridSpec(
            num_scalar_prefetch=0,
            grid=(grid_b,),
            in_specs=[
                pl.BlockSpec((block_b, c_in, L), lambda b: (b, 0, 0)),
                pl.BlockSpec((KSIZE * OUT_CH, c_in), lambda b: (0, 0)),
                pl.BlockSpec((OUT_CH, 1), lambda b: (0, 0)),
            ],
            out_specs=pl.BlockSpec((block_b, OUT_CH, L), lambda b: (b, 0, 0)),
        ),
        compiler_params=pltpu.CompilerParams(
            dimension_semantics=("parallel",),
            vmem_limit_bytes=vmem_limit,
        ),
    )(z_n, w6, bias2d)


if __name__ == "__main__":
    # Small shapes consistent with the module: z_n is (batch, zn_size, seq_len)
    B, ZN_SIZE, L = 2, 32, 16

    key = jax.random.PRNGKey(0)
    k_x, k_w, k_b = jax.random.split(key, 3)

    # Deterministic parameter init mimicking nn.Conv1d defaults:
    # uniform(-1/sqrt(fan_in), 1/sqrt(fan_in)), fan_in = zn_size * kernel_size
    fan_in = ZN_SIZE * KSIZE
    bound = 1.0 / (fan_in ** 0.5)
    weight = jax.random.uniform(
        k_w, (OUT_CH, ZN_SIZE, KSIZE), jnp.float32, -bound, bound)
    bias = jax.random.uniform(k_b, (OUT_CH,), jnp.float32, -bound, bound)

    z_n = jax.random.normal(k_x, (B, ZN_SIZE, L), dtype=jnp.float32)

    out = fine_tuning_classifier_forward(z_n, weight, bias)
    out = jax.block_until_ready(out)

    # Pure-JAX reference (lax conv) for a sanity check.
    ref = jax.lax.conv_general_dilated(
        z_n, weight, window_strides=(1,), padding=((PAD, PAD),),
        dimension_numbers=("NCH", "OIH", "NCH"),
    ) + bias.reshape(1, OUT_CH, 1)
    assert out.shape == (B, OUT_CH, L)
    assert jnp.allclose(out, ref, atol=1e-5, rtol=1e-5)

    print("KERNEL_OK")
</pallas_src>

<mosaic_0001>
module attributes {stable_mosaic.version = 11 : i64} {
  func.func @_conv1d_kernel(%arg0: i32, %arg1: memref<2x32x16xf32, #tpu.memory_space<vmem>>, %arg2: memref<6x32xf32, #tpu.memory_space<vmem>>, %arg3: memref<2x1xf32, #tpu.memory_space<vmem>>, %arg4: memref<2x2x16xf32, #tpu.memory_space<vmem>>) attributes {dimension_semantics = [#tpu.dimension_semantics<parallel>], iteration_bounds = array<i64: 1>, scalar_prefetch = 0 : i64, scratch_operands = 0 : i64, tpu.core_type = #tpu.core_type<tc>, window_params = [{transform_indices = @transform_0, window_bounds = array<i64: 2, 32, 16>}, {pipeline_mode = #tpu.pipeline_mode<synchronous>, transform_indices = @transform_1, window_bounds = array<i64: 6, 32>}, {pipeline_mode = #tpu.pipeline_mode<synchronous>, transform_indices = @transform_2, window_bounds = array<i64: 2, 1>}, {transform_indices = @transform_3, window_bounds = array<i64: 2, 2, 16>}]} {
    %c0 = arith.constant 0 : index
    %c0_0 = arith.constant 0 : index
    %c0_1 = arith.constant 0 : index
    %0 = vector.load %arg1[%c0, %c0_0, %c0_1] : memref<2x32x16xf32, #tpu.memory_space<vmem>>, vector<2x32x16xf32>
    %c0_2 = arith.constant 0 : index
    %c0_3 = arith.constant 0 : index
    %1 = vector.load %arg2[%c0_2, %c0_3] : memref<6x32xf32, #tpu.memory_space<vmem>>, vector<6x32xf32>
    %2 = vector.shape_cast %1 : vector<6x32xf32> to vector<1x6x32xf32>
    %3 = vector.shape_cast %2 : vector<1x6x32xf32> to vector<1x6x32xf32>
    %4 = vector.broadcast %3 : vector<1x6x32xf32> to vector<2x6x32xf32>
    "tpu.trace_start"() <{level = 10 : i32, message = "bpc,bcl->bpl"}> : () -> ()
    %cst = arith.constant dense<0.000000e+00> : vector<2x6x16xf32>
    %5 = tpu.matmul %4, %0, %cst {dimension_numbers = #tpu.dot_dimension_numbers<[2], [1], [1], [2], [0, 0, 0, 1, 1, 2], [0], [0]>} : vector<2x6x32xf32>, vector<2x32x16xf32>, vector<2x6x16xf32> -> vector<2x6x16xf32>
    "tpu.trace_stop"() : () -> ()
    %6 = vector.extract_strided_slice %5 {offsets = [0, 0, 0], sizes = [2, 2, 16], strides = [1, 1, 1]} : vector<2x6x16xf32> to vector<2x2x16xf32>
    %7 = vector.extract_strided_slice %5 {offsets = [0, 2, 0], sizes = [2, 2, 16], strides = [1, 1, 1]} : vector<2x6x16xf32> to vector<2x2x16xf32>
    %8 = vector.extract_strided_slice %5 {offsets = [0, 4, 0], sizes = [2, 2, 16], strides = [1, 1, 1]} : vector<2x6x16xf32> to vector<2x2x16xf32>
    %cst_4 = arith.constant 0.000000e+00 : f32
    %9 = vector.broadcast %cst_4 : f32 to vector<2x2x1xf32>
    %10 = vector.extract_strided_slice %6 {offsets = [0, 0, 0], sizes = [2, 2, 15], strides = [1, 1, 1]} : vector<2x2x16xf32> to vector<2x2x15xf32>
    %11 = tpu.concatenate %9, %10 in 2 : vector<2x2x1xf32>, vector<2x2x15xf32> -> vector<2x2x16xf32>
    %12 = arith.addf %7, %11 : vector<2x2x16xf32>
    %13 = vector.extract_strided_slice %8 {offsets = [0, 0, 1], sizes = [2, 2, 15], strides = [1, 1, 1]} : vector<2x2x16xf32> to vector<2x2x15xf32>
    %14 = tpu.concatenate %13, %9 in 2 : vector<2x2x15xf32>, vector<2x2x1xf32> -> vector<2x2x16xf32>
    %15 = arith.addf %12, %14 : vector<2x2x16xf32>
    %c0_5 = arith.constant 0 : index
    %c0_6 = arith.constant 0 : index
    %16 = vector.load %arg3[%c0_5, %c0_6] : memref<2x1xf32, #tpu.memory_space<vmem>>, vector<2x1xf32>
    %17 = vector.shape_cast %16 : vector<2x1xf32> to vector<1x2x1xf32>
    %18 = vector.broadcast %17 : vector<1x2x1xf32> to vector<2x2x16xf32>
    %19 = arith.addf %15, %18 : vector<2x2x16xf32>
    %c0_7 = arith.constant 0 : index
    %c0_8 = arith.constant 0 : index
    %c0_9 = arith.constant 0 : index
    %20 = vector.load %arg4[%c0_7, %c0_8, %c0_9] : memref<2x2x16xf32, #tpu.memory_space<vmem>>, vector<2x2x16xf32>
    tpu.vector_store %arg4[%c0_7, %c0_8, %c0_9], %19 {strides = array<i32>} : memref<2x2x16xf32, #tpu.memory_space<vmem>>, vector<2x2x16xf32>,
    return
  }
  func.func @transform_0(%arg0: i32) -> (i32, i32, i32) {
    %c0_i32 = arith.constant 0 : i32
    %c0_i32_0 = arith.constant 0 : i32
    %c0_i32_1 = arith.constant 0 : i32
    return %arg0, %c0_i32, %c0_i32_0 : i32, i32, i32
  }
  func.func @transform_1(%arg0: i32) -> (i32, i32) {
    %c0_i32 = arith.constant 0 : i32
    %c0_i32_0 = arith.constant 0 : i32
    %c0_i32_1 = arith.constant 0 : i32
    return %c0_i32, %c0_i32_0 : i32, i32
  }
  func.func @transform_2(%arg0: i32) -> (i32, i32) {
    %c0_i32 = arith.constant 0 : i32
    %c0_i32_0 = arith.constant 0 : i32
    %c0_i32_1 = arith.constant 0 : i32
    return %c0_i32, %c0_i32_0 : i32, i32
  }
  func.func @transform_3(%arg0: i32) -> (i32, i32, i32) {
    %c0_i32 = arith.constant 0 : i32
    %c0_i32_0 = arith.constant 0 : i32
    %c0_i32_1 = arith.constant 0 : i32
    return %arg0, %c0_i32, %c0_i32_0 : i32, i32, i32
  }
}

</mosaic_0001>

<llo_original>
// kernel: tpu_custom_call.1
$region0: #{tpu_custom_call.1}
  #allocation0 [shape = 'u32[]', space=smem, size = 0x4, offset = 0x4, fixed_abs, tag = 'smem constant byte address 0x4 - core index']
  #allocation1 [shape = 'u32[144,128]{1,0:T(1,128)}', space=vmem, size = 0x12000, scoped, tag = 'internal scratch']
  %s0 = inlined_call_operand.vmem [shape: f32[2,32,16], index: 0, kind: input, shape index: {}]
  %s1 = inlined_call_operand.vmem [shape: f32[6,32], index: 1, kind: input, shape index: {}]
  %s2 = inlined_call_operand.vmem [shape: f32[2,1], index: 2, kind: input, shape index: {}]
  %s3 = inlined_call_operand.hbm [shape: f32[2,2,16], index: 3, kind: output, shape index: {}]
  %s4 = sld [smem:[#allocation0]]
  $region22: #{tpu_custom_call.1} parent=0
    _
  %s6 = ssub.s32 1, %s4
  %s7 = scalar_select 0, %s6, %s4
  $region1: #{tpu_custom_call.1} parent=0
    #allocation2 [shape = 'u8[2048]{0}', space=vmem, size = 0x800, scoped, tag = 'output window, operand 0, single buffered']
    #allocation3 [shape = 's32[1]{0}', space=sflag, size = 0x4, scoped, tag = 'scoped memory for tpu_custom_call.1']
    %8 = vsyncpa [#allocation3], 0
    // Predicated region
    $region2: #{tpu_custom_call.1} parent=1 // pred_check
      _
    $region3: #{tpu_custom_call.1} parent=1 // pred_check_branch
      %10 = sbr.rel (0) target = $region5
    $region4: #{tpu_custom_call.1} parent=1 // pred_region
      _
    $region5: #{tpu_custom_call.1} parent=1 // pred_fallthru
      _
    // Predicated region
    $region6: #{tpu_custom_call.1} parent=1 // pred_check
      _
    $region7: #{tpu_custom_call.1} parent=1 // pred_check_branch
      %12 = sbr.rel (0) target = $region9
    $region8: #{tpu_custom_call.1} parent=1 // pred_region
      _
    $region9: #{tpu_custom_call.1} parent=1 // pred_fallthru
      _
    // Predicated region
    $region10: #{tpu_custom_call.1} parent=1 // pred_check
      _
    $region11: #{tpu_custom_call.1} parent=1 // pred_check_branch
      %14 = sbr.rel (0) target = $region13
    $region12: #{tpu_custom_call.1} parent=1 // pred_region
      _
    $region13: #{tpu_custom_call.1} parent=1 // pred_fallthru
      _
    %v15 = vld [vmem:[%s0] sm:$0xff]
    %v16 = vld [vmem:[%s0 + $0x8] sm:$0xff]
    %v17 = vld [vmem:[%s0 + $0x10] sm:$0xff]
    %v18 = vld [vmem:[%s0 + $0x18] sm:$0xff]
    %v19 = vld [vmem:[%s0 + $0x20] sm:$0xff]
    %v20 = vld [vmem:[%s0 + $0x28] sm:$0xff]
    %v21 = vld [vmem:[%s0 + $0x30] sm:$0xff]
    %v22 = vld [vmem:[%s0 + $0x38] sm:$0xff]
    %v23 = vld [vmem:[%s1] sm:$0x3f]
    %vm24 = vcmask 261120
    %v26 = vsel %vm24, %v23, 0
    %28 = vmatprep.subr.mxu0 0.0
    %29 = vmatpush1.msra.mxu0 %v15
    %30 = vmatprep.subr.mxu0 0.0
    %31 = vmatpush1.msra.mxu0 %v16
    %32 = vmatprep.subr.mxu0 0.0
    %33 = vmatpush1.msra.mxu0 %v17
    %34 = vmatprep.subr.mxu0 0.0
    %35 = vmatpush1.msra.mxu0 %v18
    %36 = vmatprep.subr.mxu0 0.0
    %37 = vmatpush1.msra.mxu0 0.0
    %38 = vmatprep.subr.mxu0 0.0
    %39 = vmatpush1.msra.mxu0 0.0
    %40 = vmatprep.subr.mxu0 0.0
    %41 = vmatpush1.msra.mxu0 0.0
    %42 = vmatprep.subr.mxu0 0.0
    %43 = vmatpush1.msra.mxu0 0.0
    %44 = vmatprep.subr.mxu0 0.0
    %45 = vmatpush1.msra.mxu0 0.0
    %46 = vmatprep.subr.mxu0 0.0
    %47 = vmatpush1.msra.mxu0 0.0
    %48 = vmatprep.subr.mxu0 0.0
    %49 = vmatpush1.msra.mxu0 0.0
    %50 = vmatprep.subr.mxu0 0.0
    %51 = vmatpush1.msra.mxu0 0.0
    %52 = vmatprep.subr.mxu0 0.0
    %53 = vmatpush1.msra.mxu0 0.0
    %54 = vmatprep.subr.mxu0 0.0
    %55 = vmatpush1.msra.mxu0 0.0
    %56 = vmatprep.subr.mxu0 0.0
    %57 = vmatpush1.msra.mxu0 0.0
    %58 = vmatprep.subr.mxu0 0.0
    %59 = vmatpush1.msra.mxu0 0.0
    %60 = vmatprep.subr.mxu0 0.0
    %61 = vmatpush1.msra.mxu0 0.0
    %62 = vmatprep.subr.mxu0 0.0
    %63 = vmatpush1.msra.mxu0 0.0
    %64 = vmatprep.subr.mxu0 0.0
    %65 = vmatpush1.msra.mxu0 0.0
    %66 = vmatprep.subr.mxu0 0.0
    %67 = vmatpush1.msra.mxu0 0.0
    %68 = vmatprep.subr.mxu0 0.0
    %69 = vmatpush1.msra.mxu0 0.0
    %70 = vmatprep.subr.mxu0 0.0
    %71 = vmatpush1.msra.mxu0 0.0
    %72 = vmatprep.subr.mxu0 0.0
    %73 = vmatpush1.msra.mxu0 0.0
    %74 = vmatprep.subr.mxu0 0.0
    %75 = vmatpush1.msra.mxu0 0.0
    %76 = vmatprep.subr.mxu0 0.0
    %77 = vmatpush1.msra.mxu0 0.0
    %78 = vmatprep.subr.mxu0 0.0
    %79 = vmatpush1.msra.mxu0 0.0
    %80 = vmatprep.subr.mxu0 0.0
    %81 = vmatpush1.msra.mxu0 0.0
    %82 = vmatprep.subr.mxu0 0.0
    %83 = vmatpush1.msra.mxu0 0.0
    %84 = vmatprep.subr.mxu0 0.0
    %85 = vmatpush1.msra.mxu0 0.0
    %86 = vmatprep.subr.mxu0 0.0
    %87 = vmatpush1.msra.mxu0 0.0
    %88 = vmatprep.subr.mxu0 0.0
    %89 = vmatpush1.msra.mxu0 0.0
    %90 = vmatprep.subr.mxu0 0.0
    %91 = vmatpush1.msra.mxu0 0.0
    %92 = vmatprep.mubr.f32.mxu0 0.0
    %93 = vmatmul.mubr.f32.gmra.mrb[0].mxu0 %v26
    %v94 = vpop.f32.mrb[0].mxu0
    %v95 = vadd.f32 0.0, %v94
    %v96 = vpop.f32.mrb[0].mxu0
    %97 = vdwg.mxu0
    %98 = vmatprep.subr.mxu0 0.0
    %99 = vmatpush1.msra.mxu0 %v19
    %100 = vmatprep.subr.mxu0 0.0
    %101 = vmatpush1.msra.mxu0 %v20
    %102 = vmatprep.subr.mxu0 0.0
    %103 = vmatpush1.msra.mxu0 %v21
    %104 = vmatprep.subr.mxu0 0.0
    %105 = vmatpush1.msra.mxu0 %v22
    %106 = vmatprep.subr.mxu0 0.0
    %107 = vmatpush1.msra.mxu0 0.0
    %108 = vmatprep.subr.mxu0 0.0
    %109 = vmatpush1.msra.mxu0 0.0
    %110 = vmatprep.subr.mxu0 0.0
    %111 = vmatpush1.msra.mxu0 0.0
    %112 = vmatprep.subr.mxu0 0.0
    %113 = vmatpush1.msra.mxu0 0.0
    %114 = vmatprep.subr.mxu0 0.0
    %115 = vmatpush1.msra.mxu0 0.0
    %116 = vmatprep.subr.mxu0 0.0
    %117 = vmatpush1.msra.mxu0 0.0
    %118 = vmatprep.subr.mxu0 0.0
    %119 = vmatpush1.msra.mxu0 0.0
    %120 = vmatprep.subr.mxu0 0.0
    %121 = vmatpush1.msra.mxu0 0.0
    %122 = vmatprep.subr.mxu0 0.0
    %123 = vmatpush1.msra.mxu0 0.0
    %124 = vmatprep.subr.mxu0 0.0
    %125 = vmatpush1.msra.mxu0 0.0
    %126 = vmatprep.subr.mxu0 0.0
    %127 = vmatpush1.msra.mxu0 0.0
    %128 = vmatprep.subr.mxu0 0.0
    %129 = vmatpush1.msra.mxu0 0.0
    %130 = vmatprep.subr.mxu0 0.0
    %131 = vmatpush1.msra.mxu0 0.0
    %132 = vmatprep.subr.mxu0 0.0
    %133 = vmatpush1.msra.mxu0 0.0
    %134 = vmatprep.subr.mxu0 0.0
    %135 = vmatpush1.msra.mxu0 0.0
    %136 = vmatprep.subr.mxu0 0.0
    %137 = vmatpush1.msra.mxu0 0.0
    %138 = vmatprep.subr.mxu0 0.0
    %139 = vmatpush1.msra.mxu0 0.0
    %140 = vmatprep.subr.mxu0 0.0
    %141 = vmatpush1.msra.mxu0 0.0
    %142 = vmatprep.subr.mxu0 0.0
    %143 = vmatpush1.msra.mxu0 0.0
    %144 = vmatprep.subr.mxu0 0.0
    %145 = vmatpush1.msra.mxu0 0.0
    %146 = vmatprep.subr.mxu0 0.0
    %147 = vmatpush1.msra.mxu0 0.0
    %148 = vmatprep.subr.mxu0 0.0
    %149 = vmatpush1.msra.mxu0 0.0
    %150 = vmatprep.subr.mxu0 0.0
    %151 = vmatpush1.msra.mxu0 0.0
    %152 = vmatprep.subr.mxu0 0.0
    %153 = vmatpush1.msra.mxu0 0.0
    %154 = vmatprep.subr.mxu0 0.0
    %155 = vmatpush1.msra.mxu0 0.0
    %156 = vmatprep.subr.mxu0 0.0
    %157 = vmatpush1.msra.mxu0 0.0
    %158 = vmatprep.subr.mxu0 0.0
    %159 = vmatpush1.msra.mxu0 0.0
    %160 = vmatprep.subr.mxu0 0.0
    %161 = vmatpush1.msra.mxu0 0.0
    %162 = vmatprep.mubr.f32.mxu0 0.0
    %163 = vmatmul.mubr.f32.gmra.mrb[0].mxu0 %v26
    %v164 = vpop.f32.mrb[0].mxu0
    %v165 = vadd.f32 0.0, %v164
    %v166 = vpop.f32.mrb[0].mxu0
    %167 = vdwg.mxu0
    %170 = vrot.lane.b32.xlu0 %v95, 1
    %v171 = vpop.permute.xlu0 %170
    %172 = vrot.lane.b32.xlu0 %v165, 1
    %v173 = vpop.permute.xlu0 %172
    %vm176 = vcmask 7168
    %v177 = vsel %vm176, 0.0, %v171
    %v178 = vsel %vm176, 0.0, %v173
    %v181 = vrot.slane %v177, 6
    %v182 = vrot.slane %v178, 6
    %v185 = vadd.f32 %v95, %v181
    %v186 = vadd.f32 %v165, %v182
    %187 = vrot.lane.b32.xlu0 %v95, 127
    %v188 = vpop.permute.xlu0 %187
    %189 = vrot.lane.b32.xlu0 %v165, 127
    %v190 = vpop.permute.xlu0 %189
    %vm193 = vcmask 121856
    %v194 = vsel %vm193, %v188, 0.0
    %v195 = vsel %vm193, %v190, 0.0
    %v198 = vrot.slane %v194, 2
    %v199 = vrot.slane %v195, 2
    %v202 = vadd.f32 %v185, %v198
    %v203 = vadd.f32 %v186, %v199
    %v204 = vld [vmem:[%s2] sm:$0x3]
    %206 = vset.pattern.permute.xlu0 0
    %207 = vperm.xlu0 %206, %v204
    %v208 = vpop.permute.xlu0 %207
    %v209 = vrot.slane %v208, 6
    %v211 = vadd.f32 %v202, %v209
    %v212 = vadd.f32 %v203, %v209
    %vm213 = vcmask 125954
    %214 = vst.msk [vmem:[#allocation2 - $0x2] sm:$0xc] %vm213, %v211
    %215 = vst.msk [vmem:[#allocation2] sm:$0xc] %vm213, %v212
    // Predicated region
    $region14: #{tpu_custom_call.1} parent=1 // pred_check
      _
    $region15: #{tpu_custom_call.1} parent=1 // pred_check_branch
      %217 = sbr.rel (0) target = $region17
    $region16: #{tpu_custom_call.1} parent=1 // pred_region
      %s219 = ssub.s32 64, 64
      %220 = vsyncadd [#allocation3], %s219
      %s221 = sshll.u32 [#allocation2], 4
      %s222 = int_to_ptr.vmem [resolvable:$true] %s221
      %227 = dma.vmem_to_hbm [thread:$0]  %s222, 64, %s3, [#allocation3], 32, 32, 2
    $region17: #{tpu_custom_call.1} parent=1 // pred_fallthru
      _
    // Predicated region
    $region18: #{tpu_custom_call.1} parent=1 // pred_check
      _
    $region19: #{tpu_custom_call.1} parent=1 // pred_check_branch
      %229 = sbr.rel (0) target = $region21
    $region20: #{tpu_custom_call.1} parent=1 // pred_region
      %230 = dma.done [#allocation3], 64
    $region21: #{tpu_custom_call.1} parent=1 // pred_fallthru
      _
    %231 = vsyncpa [#allocation3], 1

</llo_original>
